<compile_context>
chip_gen: v6e
topology: v6e:2x2x1
jax: 0.10.0
libtpu: 0.0.40
codegen_flags: <defaults>
</compile_context>

<pallas_src>
import functools
import math

import jax
import jax.numpy as jnp
import numpy as np
from jax import lax
from jax.experimental import pallas as pl
from jax.experimental.pallas import tpu as pltpu

LOG_2PI = math.log(2.0 * math.pi)
_MiB = 1024 * 1024


# ----------------------------------------------------------------------------
# Hardware-aware sizing helpers
# ----------------------------------------------------------------------------
def _physical_vmem_bytes():
    """Per-core physical VMEM; conservative (v7x = 64 MiB) default if unknown."""
    try:
        cap = getattr(pltpu.get_tpu_info(), "vmem_capacity_bytes", None)
        if cap:
            return int(cap)
    except Exception:
        pass
    return 64 * _MiB


def _sublane_multiple(dtype):
    """Minimum second-to-last block dim: 8 (4-byte), 16 (2-byte), 32 (1-byte)."""
    return max(8, 32 // jnp.dtype(dtype).itemsize)


# ----------------------------------------------------------------------------
# Fused per-batch moment kernel:  s1 = sum(x), s2 = sum(x^2) over (C,H,W)
# ----------------------------------------------------------------------------
def _make_moments_kernel(n_elems, block_n, r_per_split, needs_mask):
    def kernel(x_ref, s1_out_ref, s2_out_ref, s1_ref, s2_ref):
        r = pl.program_id(2)

        @pl.when(r == 0)
        def _init():
            s1_ref[...] = jnp.zeros_like(s1_ref)
            s2_ref[...] = jnp.zeros_like(s2_ref)

        x = x_ref[...].astype(jnp.float32)          # (block_b, block_n)
        if needs_mask:
            # Global column index of each lane; zero out padded tail lanes and
            # phantom (clamped) tiles so they contribute nothing.
            tile = pl.program_id(0) * r_per_split + r
            col = tile * block_n + lax.broadcasted_iota(jnp.int32, x.shape, 1)
            x = jnp.where(col < n_elems, x, 0.0)

        s1_ref[...] += jnp.sum(x, axis=1, keepdims=True)
        s2_ref[...] += jnp.sum(x * x, axis=1, keepdims=True)

        @pl.when(r == pl.num_programs(2) - 1)
        def _finalize():
            s1_out_ref[...] = s1_ref[...][None]     # (1, block_b, 1)
            s2_out_ref[...] = s2_ref[...][None]

    return kernel


@functools.partial(jax.jit, static_argnames=("max_block_bytes",))
def _prior_loss_stats(x4d, max_block_bytes=None):
    """Returns (-logp_prior(x) per batch [B], unbiased std(x) per batch [B])."""
    B, C, H, W = x4d.shape
    N = C * H * W
    # Trailing-dim collapse: a layout no-op under the default row-major layout
    # (and fused away under jit), so no extra HBM pass in front of the kernel.
    xf = x4d.reshape(B, N)
    itemsize = jnp.dtype(x4d.dtype).itemsize

    # ---- generation-aware VMEM budget / block-byte target -------------------
    vmem_cap = _physical_vmem_bytes()
    vmem_limit = max(32 * _MiB, min(int(vmem_cap * 0.7), 64 * _MiB))
    block_budget = min(8 * _MiB, vmem_limit // 3)   # 2 bufs + headroom fit easily
    if max_block_bytes is not None:
        block_budget = int(max_block_bytes)

    # ---- batch tiling (dtype-aware; never pad / copy x) ----------------------
    if B <= 64:
        block_b = B                                  # full dim: legal for any dtype
    else:
        m = max(_sublane_multiple(x4d.dtype), 32)    # 32-multiple covers all dtypes
        block_b = min(256, (B // m) * m)
    n_bt = pl.cdiv(B, block_b)                       # ragged last batch tile is OK:
    # garbage rows never mix across rows and are dropped on output writeback.

    # ---- reduction tiling (128-multiple block_n bounded by VMEM budget) ------
    budget_lanes = max(128, (block_budget // (block_b * itemsize)) // 128 * 128)
    block_n = N if N <= budget_lanes else budget_lanes
    R = pl.cdiv(N, block_n)

    # ---- ensure >=2 parallel grid steps (keeps both v7x TensorCores busy) ----
    n_split = 2 if (n_bt < 2 and R >= 2) else 1
    r_per_split = pl.cdiv(R, n_split)
    needs_mask = (n_split * r_per_split * block_n) != N

    kernel = _make_moments_kernel(N, block_n, r_per_split, needs_mask)

    def x_map(s, b, r):
        # Clamp phantom tiles (odd tile count with n_split=2) onto the last real
        # tile; the kernel masks their contribution to zero.
        return (b, jnp.minimum(s * r_per_split + r, R - 1))

    s1p, s2p = pl.pallas_call(
        kernel,
        grid=(n_split, n_bt, r_per_split),           # reduction axis last
        out_shape=(
            jax.ShapeDtypeStruct((n_split, B, 1), jnp.float32),
            jax.ShapeDtypeStruct((n_split, B, 1), jnp.float32),
        ),
        in_specs=[pl.BlockSpec((block_b, block_n), x_map)],
        out_specs=(
            pl.BlockSpec((1, block_b, 1), lambda s, b, r: (s, b, 0)),
            pl.BlockSpec((1, block_b, 1), lambda s, b, r: (s, b, 0)),
        ),
        scratch_shapes=[
            pltpu.VMEM((block_b, 1), jnp.float32),   # running sum(x)
            pltpu.VMEM((block_b, 1), jnp.float32),   # running sum(x^2)
        ],
        compiler_params=pltpu.CompilerParams(
            dimension_semantics=("parallel", "parallel", "arbitrary"),
            vmem_limit_bytes=vmem_limit,
        ),
    )(xf)

    # ---- tiny per-batch finalize in plain JAX (combines split halves) --------
    s1 = jnp.sum(s1p[..., 0], axis=0)                # (B,)
    s2 = jnp.sum(s2p[..., 0], axis=0)                # (B,)
    n = float(N)
    # -logp_prior(x) = 0.5 * (N*log(2*pi) + sum(x^2))
    neg_log_z = 0.5 * (n * LOG_2PI + s2)
    # unbiased variance over (C,H,W): (sum(x^2) - sum(x)^2/N) / (N-1)
    var = (s2 - (s1 * s1) / n) / (n - 1.0)
    sd = jnp.sqrt(jnp.maximum(var, 0.0))
    return neg_log_z, sd


# ----------------------------------------------------------------------------
# NoiseFlow wrapper (JAX glue around the kernel)
# ----------------------------------------------------------------------------
class NoiseFlow:
    def __init__(self, x_shape, arch, flow_permutation, param_inits, lu_decomp):
        self.x_shape = tuple(x_shape)          # (C, H, W)
        self.arch = arch
        self.flow_permutation = flow_permutation
        self.param_inits = param_inits
        self.decomp = lu_decomp
        self.layers = []
        for lyr in [l for l in arch.split("|") if l]:
            # TODO(synk): Conv2d1x1 / AffineCoupling / LinearTransformation /
            # SignalDependant / Gain bijector sources were not provided, so their
            # forward-and-log-det cannot be reproduced; these layers are skipped.
            print("|-Skipping unsupported bijector layer: %s" % lyr)

    # --- forward: with an empty bijector chain this is exactly z = x ----------
    def forward(self, x):
        B = x.shape[0]
        return x, jnp.zeros((B,), dtype=jnp.float32)

    # --- inverse: identity with an empty bijector chain -----------------------
    def inverse(self, z):
        return z

    # TODO(synk): sample() requires the prior eps draw + inverse bijector chain;
    # not implemented since the bijector sources are unavailable.

    # --- _loss: prior logp + per-batch std (single fused Pallas kernel) -------
    def _loss(self, x):
        z, objective = self.forward(x)
        # With an empty arch z == x, so the prior input (z) and the variance
        # input (x) are the same tensor and the fused kernel reads it once.
        neg_log_z, sd = _prior_loss_stats(z)
        nobj = neg_log_z - objective          # -(objective + logp(z))
        sd_z = jnp.mean(sd)
        return nobj, sd_z

    def loss(self, x):
        nll, sd_z = self._loss(x)
        nll_dim = jnp.mean(nll) / float(np.prod(x.shape[1:]))
        return nll_dim, sd_z


# ----------------------------------------------------------------------------
if __name__ == "__main__":
    def reference_stats(x):
        xf = np.asarray(x, dtype=np.float32)
        flat = xf.reshape(xf.shape[0], -1)
        logp = np.sum(-0.5 * (LOG_2PI + flat ** 2), axis=1)
        nobj = -logp
        sd = np.sqrt(flat.var(axis=1, ddof=1))
        return nobj, sd

    key = jax.random.PRNGKey(0)

    # --- main shape -----------------------------------------------------------
    B, C, H, W = 2, 4, 16, 16
    x = jax.random.normal(key, (B, C, H, W), dtype=jnp.float32)

    nf = NoiseFlow(x_shape=(C, H, W), arch="", flow_permutation=1,
                   param_inits=None, lu_decomp=False)

    z, objective = nf.forward(x)
    nll, sd_from_loss = nf._loss(x)
    nll_dim, sd_z = nf.loss(x)
    jax.block_until_ready((z, objective, nll, nll_dim, sd_z, sd_from_loss))

    ref_nobj, ref_sd = reference_stats(x)
    assert np.allclose(np.asarray(z), np.asarray(x), atol=1e-6)
    assert np.allclose(np.asarray(objective), np.zeros(B), atol=1e-6)
    assert np.allclose(np.asarray(nll), ref_nobj, rtol=1e-5, atol=1e-4)
    assert np.allclose(float(nll_dim), float(ref_nobj.mean() / (C * H * W)),
                       rtol=1e-5, atol=1e-5)
    assert np.allclose(float(sd_z), float(ref_sd.mean()), rtol=1e-5, atol=1e-5)
    assert np.allclose(float(sd_from_loss), float(ref_sd.mean()), rtol=1e-5, atol=1e-5)

    # --- coverage: tiled reduction + split axis + lane masking (N=867) --------
    x2 = jax.random.normal(jax.random.PRNGKey(1), (2, 3, 17, 17), dtype=jnp.float32)
    nl2, sd2 = _prior_loss_stats(x2, max_block_bytes=1024)   # forces block_n=128
    jax.block_until_ready((nl2, sd2))
    r_nobj2, r_sd2 = reference_stats(x2)
    assert np.allclose(np.asarray(nl2), r_nobj2, rtol=1e-5, atol=1e-3)
    assert np.allclose(np.asarray(sd2), r_sd2, rtol=1e-4, atol=1e-5)

    # --- coverage: ragged batch tile + bf16 input ------------------------------
    x3 = jax.random.normal(jax.random.PRNGKey(2), (70, 2, 5, 7),
                           dtype=jnp.float32).astype(jnp.bfloat16)
    nl3, sd3 = _prior_loss_stats(x3)
    jax.block_until_ready((nl3, sd3))
    r_nobj3, r_sd3 = reference_stats(np.asarray(x3).astype(np.float32))
    assert np.allclose(np.asarray(nl3), r_nobj3, rtol=1e-4, atol=1e-3)
    assert np.allclose(np.asarray(sd3), r_sd3, rtol=1e-4, atol=1e-4)

    print("KERNEL_OK")
</pallas_src>

<mosaic_0001>
module attributes {stable_mosaic.version = 11 : i64} {
  func.func @kernel(%arg0: i32, %arg1: i32, %arg2: i32, %arg3: memref<2x1024xf32, #tpu.memory_space<vmem>>, %arg4: memref<1x2x1xf32, #tpu.memory_space<vmem>>, %arg5: memref<1x2x1xf32, #tpu.memory_space<vmem>>, %arg6: memref<2x1xf32, #tpu.memory_space<vmem>>, %arg7: memref<2x1xf32, #tpu.memory_space<vmem>>) attributes {dimension_semantics = [#tpu.dimension_semantics<parallel>, #tpu.dimension_semantics<parallel>, #tpu.dimension_semantics<arbitrary>], iteration_bounds = array<i64: 1, 1, 1>, scalar_prefetch = 0 : i64, scratch_operands = 2 : i64, tpu.core_type = #tpu.core_type<tc>, window_params = [{transform_indices = @transform_0, window_bounds = array<i64: 2, 1024>}, {transform_indices = @transform_1, window_bounds = array<i64: 1, 2, 1>}, {transform_indices = @transform_2, window_bounds = array<i64: 1, 2, 1>}]} {
    %c0_i32 = arith.constant 0 : i32
    %0 = arith.cmpi eq, %arg2, %c0_i32 : i32
    %1 = arith.extui %0 : i1 to i32
    %c0_i32_0 = arith.constant 0 : i32
    %2 = arith.cmpi ne, %1, %c0_i32_0 : i32
    scf.if %2 {
      %cst_13 = arith.constant 0.000000e+00 : f32
      %18 = vector.broadcast %cst_13 : f32 to vector<2x1xf32>
      %c0_14 = arith.constant 0 : index
      %c0_15 = arith.constant 0 : index
      %19 = vector.load %arg6[%c0_14, %c0_15] : memref<2x1xf32, #tpu.memory_space<vmem>>, vector<2x1xf32>
      tpu.vector_store %arg6[%c0_14, %c0_15], %18 {strides = array<i32>} : memref<2x1xf32, #tpu.memory_space<vmem>>, vector<2x1xf32>,
      %cst_16 = arith.constant 0.000000e+00 : f32
      %20 = vector.broadcast %cst_16 : f32 to vector<2x1xf32>
      %c0_17 = arith.constant 0 : index
      %c0_18 = arith.constant 0 : index
      %21 = vector.load %arg7[%c0_17, %c0_18] : memref<2x1xf32, #tpu.memory_space<vmem>>, vector<2x1xf32>
      tpu.vector_store %arg7[%c0_17, %c0_18], %20 {strides = array<i32>} : memref<2x1xf32, #tpu.memory_space<vmem>>, vector<2x1xf32>,
    } else {
    }
    %c0 = arith.constant 0 : index
    %c0_1 = arith.constant 0 : index
    %3 = vector.load %arg3[%c0, %c0_1] : memref<2x1024xf32, #tpu.memory_space<vmem>>, vector<2x1024xf32>
    %c0_2 = arith.constant 0 : index
    %c0_3 = arith.constant 0 : index
    %4 = vector.load %arg6[%c0_2, %c0_3] : memref<2x1xf32, #tpu.memory_space<vmem>>, vector<2x1xf32>
    %cst = arith.constant dense<0.000000e+00> : vector<2xf32>
    %5 = vector.multi_reduction <add>, %3, %cst [1] : vector<2x1024xf32> to vector<2xf32>
    %6 = vector.shape_cast %5 : vector<2xf32> to vector<2x1xf32>
    %7 = arith.addf %4, %6 : vector<2x1xf32>
    %c0_4 = arith.constant 0 : index
    %c0_5 = arith.constant 0 : index
    %8 = vector.load %arg6[%c0_4, %c0_5] : memref<2x1xf32, #tpu.memory_space<vmem>>, vector<2x1xf32>
    tpu.vector_store %arg6[%c0_4, %c0_5], %7 {strides = array<i32>} : memref<2x1xf32, #tpu.memory_space<vmem>>, vector<2x1xf32>,
    %c0_6 = arith.constant 0 : index
    %c0_7 = arith.constant 0 : index
    %9 = vector.load %arg7[%c0_6, %c0_7] : memref<2x1xf32, #tpu.memory_space<vmem>>, vector<2x1xf32>
    %10 = arith.mulf %3, %3 : vector<2x1024xf32>
    %cst_8 = arith.constant dense<0.000000e+00> : vector<2xf32>
    %11 = vector.multi_reduction <add>, %10, %cst_8 [1] : vector<2x1024xf32> to vector<2xf32>
    %12 = vector.shape_cast %11 : vector<2xf32> to vector<2x1xf32>
    %13 = arith.addf %9, %12 : vector<2x1xf32>
    %c0_9 = arith.constant 0 : index
    %c0_10 = arith.constant 0 : index
    %14 = vector.load %arg7[%c0_9, %c0_10] : memref<2x1xf32, #tpu.memory_space<vmem>>, vector<2x1xf32>
    tpu.vector_store %arg7[%c0_9, %c0_10], %13 {strides = array<i32>} : memref<2x1xf32, #tpu.memory_space<vmem>>, vector<2x1xf32>,
    %c0_i32_11 = arith.constant 0 : i32
    %15 = arith.cmpi eq, %arg2, %c0_i32_11 : i32
    %16 = arith.extui %15 : i1 to i32
    %c0_i32_12 = arith.constant 0 : i32
    %17 = arith.cmpi ne, %16, %c0_i32_12 : i32
    scf.if %17 {
      %c0_13 = arith.constant 0 : index
      %c0_14 = arith.constant 0 : index
      %18 = vector.load %arg6[%c0_13, %c0_14] : memref<2x1xf32, #tpu.memory_space<vmem>>, vector<2x1xf32>
      %19 = vector.shape_cast %18 : vector<2x1xf32> to vector<1x2x1xf32>
      %c0_15 = arith.constant 0 : index
      %c0_16 = arith.constant 0 : index
      %c0_17 = arith.constant 0 : index
      %20 = vector.load %arg4[%c0_15, %c0_16, %c0_17] : memref<1x2x1xf32, #tpu.memory_space<vmem>>, vector<1x2x1xf32>
      tpu.vector_store %arg4[%c0_15, %c0_16, %c0_17], %19 {strides = array<i32>} : memref<1x2x1xf32, #tpu.memory_space<vmem>>, vector<1x2x1xf32>,
      %c0_18 = arith.constant 0 : index
      %c0_19 = arith.constant 0 : index
      %21 = vector.load %arg7[%c0_18, %c0_19] : memref<2x1xf32, #tpu.memory_space<vmem>>, vector<2x1xf32>
      %22 = vector.shape_cast %21 : vector<2x1xf32> to vector<1x2x1xf32>
      %c0_20 = arith.constant 0 : index
      %c0_21 = arith.constant 0 : index
      %c0_22 = arith.constant 0 : index
      %23 = vector.load %arg5[%c0_20, %c0_21, %c0_22] : memref<1x2x1xf32, #tpu.memory_space<vmem>>, vector<1x2x1xf32>
      tpu.vector_store %arg5[%c0_20, %c0_21, %c0_22], %22 {strides = array<i32>} : memref<1x2x1xf32, #tpu.memory_space<vmem>>, vector<1x2x1xf32>,
    } else {
    }
    return
  }
  func.func @transform_0(%arg0: i32, %arg1: i32, %arg2: i32) -> (i32, i32) {
    %c1_i32 = arith.constant 1 : i32
    %0 = arith.muli %arg0, %c1_i32 : i32
    %1 = arith.addi %0, %arg2 : i32
    %c0_i32 = arith.constant 0 : i32
    %2 = arith.minsi %1, %c0_i32 : i32
    %c0_i32_0 = arith.constant 0 : i32
    return %arg1, %2 : i32, i32
  }
  func.func @transform_1(%arg0: i32, %arg1: i32, %arg2: i32) -> (i32, i32, i32) {
    %c0_i32 = arith.constant 0 : i32
    %c0_i32_0 = arith.constant 0 : i32
    return %arg0, %arg1, %c0_i32 : i32, i32, i32
  }
  func.func @transform_2(%arg0: i32, %arg1: i32, %arg2: i32) -> (i32, i32, i32) {
    %c0_i32 = arith.constant 0 : i32
    %c0_i32_0 = arith.constant 0 : i32
    return %arg0, %arg1, %c0_i32 : i32, i32, i32
  }
}

</mosaic_0001>

<llo_original>
// kernel: _prior_loss_stats.1
$region0: #{_prior_loss_stats.1}
  #allocation0 [shape = 'u32[]', space=smem, size = 0x4, offset = 0x4, fixed_abs, tag = 'smem constant byte address 0x4 - core index']
  #allocation1 [shape = 'u32[144,128]{1,0:T(1,128)}', space=vmem, size = 0x12000, scoped, tag = 'internal scratch']
  #allocation2 [shape = 'f32[2,1]{1,0:T(2,128)}', space=vmem, size = 0x400, scoped, tag = 'scratch operand']
  #allocation3 [shape = 'f32[2,1]{1,0:T(2,128)}', space=vmem, size = 0x400, scoped, tag = 'scratch operand']
  %s0 = inlined_call_operand.vmem [shape: f32[2,1024], index: 0, kind: input, shape index: {}]
  %s1 = inlined_call_operand.vmem [shape: f32[1,2,1], index: 1, kind: output, shape index: {0}]
  %s2 = inlined_call_operand.vmem [shape: f32[1,2,1], index: 2, kind: output, shape index: {1}]
  %3 = xla_tuple %s1, %s2
  %s4 = sld [smem:[#allocation0]]
  $region30: #{_prior_loss_stats.1} parent=0
    _
  %s6 = ssub.s32 1, %s4
  %s7 = scalar_select 0, %s6, %s4
  // Predicated region
  $region2: #{_prior_loss_stats.1} parent=0 // pred_check
    _
  $region3: #{_prior_loss_stats.1} parent=0 // pred_check_branch
    %9 = sbr.rel (0) target = $region5
  $region4: #{_prior_loss_stats.1} parent=0 // pred_region
    %s10 = sadd.s32 0, 0
    %p11 = scmp.lt.s32.totalorder %s10, 0
    %s12 = scalar_select %p11, %s10, 0
    %s13 = smul.u32 8, %s12
    %p14 = scmp.lt.s32.totalorder %s13, 7
    %s15 = scalar_select %p14, %s13, 7
    %s16 = smul.addr %s15, 2
    %s17 = scalar_lea.vmem %s0, %s16
    %s18 = sadd.s32 0, 0
    %p19 = scmp.lt.s32.totalorder %s18, 0
    %s20 = scalar_select %p19, %s18, 0
    %s21 = smul.u32 8, %s20
  $region5: #{_prior_loss_stats.1} parent=0 // pred_fallthru
    _
  %s22 = sadd.s32 0, 0
  %p23 = scmp.lt.s32.totalorder %s22, 0
  %s24 = scalar_select %p23, %s22, 0
  %s25 = smul.u32 8, %s24
  %p26 = scmp.lt.s32.totalorder %s25, 7
  %s27 = scalar_select %p26, %s25, 7
  %s28 = smul.addr %s27, 2
  %s29 = scalar_lea.vmem %s0, %s28
  %s30 = sadd.s32 0, 0
  %p31 = scmp.lt.s32.totalorder %s30, 0
  %s32 = scalar_select %p31, %s30, 0
  %s33 = smul.u32 8, %s32
  %p34 = scmp.lt.s32.totalorder %s33, 7
  %s35 = scalar_select %p34, %s33, 7
  %s36 = smul.addr %s35, 2
  %s37 = scalar_lea.vmem %s0, %s36
  %s38 = sadd.s32 0, 0
  %p39 = scmp.lt.s32.totalorder %s38, 0
  %s40 = scalar_select %p39, %s38, 0
  %s41 = smul.u32 8, %s40
  %p42 = scmp.eq.s32.totalorder 0, 0
  // Predicated region
  $region6: #{_prior_loss_stats.1} parent=0 // pred_check
    %p43 = pneg %p42
  $region7: #{_prior_loss_stats.1} parent=0 // pred_check_branch
    %45 = sbr.rel (%p43) target = $region9
  $region8: #{_prior_loss_stats.1} parent=0 // pred_region
    %vm46 = vcmask 1024
    %47 = vst.msk [vmem:[#allocation2] sm:$0x3] %vm46, 0.0
    %48 = vst.msk [vmem:[#allocation3] sm:$0x3] %vm46, 0.0
  $region9: #{_prior_loss_stats.1} parent=0 // pred_fallthru
    _
  %v49 = vld [vmem:[%s37] sm:$0xff]
  %v50 = vld [vmem:[%s37 + $0x8] sm:$0xff]
  %v51 = vld [vmem:[#allocation2] sm:$0x3]
  %v54 = vcombine.high %v49, %v49
  %v56 = vunpack.c.l.s4 1983009808
  %v57 = vunpack.c.0.s8 %v56
  %v58 = vlaneseq
  %v59 = vshrl.u32 %v58, 7
  %v60 = vsub.s32 %v57, %v59
  %v61 = vrot.slane %v49, %v60
  %v63 = vunpack.c.l.s4 1983009808
  %v64 = vunpack.c.0.s8 %v63
  %v65 = vlaneseq
  %v66 = vshrl.u32 %v65, 7
  %v67 = vsub.s32 %v64, %v66
  %v68 = vrot.slane %v54, %v67
  %v69 = vcombine.high %v61, %v61
  %v70 = vcombine.high %v68, %v68
  %v71 = vcombine.high %v50, %v50
  %v73 = vunpack.c.l.s4 1983009808
  %v74 = vunpack.c.0.s8 %v73
  %v75 = vlaneseq
  %v76 = vshrl.u32 %v75, 7
  %v77 = vsub.s32 %v74, %v76
  %v78 = vrot.slane %v50, %v77
  %v80 = vunpack.c.l.s4 1983009808
  %v81 = vunpack.c.0.s8 %v80
  %v82 = vlaneseq
  %v83 = vshrl.u32 %v82, 7
  %v84 = vsub.s32 %v81, %v83
  %v85 = vrot.slane %v71, %v84
  %v86 = vcombine.high %v78, %v78
  %v87 = vcombine.high %v85, %v85
  %vm96 = vcmask 1041408
  %v97 = vsel %vm96, %v61, 0.0
  %v98 = vsel %vm96, %v69, 0.0
  %v99 = vadd.f32 %v97, %v98
  %v100 = vsel %vm96, %v68, 0.0
  %v101 = vadd.f32 %v99, %v100
  %v102 = vsel %vm96, %v70, 0.0
  %v103 = vadd.f32 %v101, %v102
  %v104 = vsel %vm96, %v78, 0.0
  %v105 = vadd.f32 %v103, %v104
  %v106 = vsel %vm96, %v86, 0.0
  %v107 = vadd.f32 %v105, %v106
  %v108 = vsel %vm96, %v85, 0.0
  %v109 = vadd.f32 %v107, %v108
  %v110 = vsel %vm96, %v87, 0.0
  %v111 = vadd.f32 %v109, %v110
  %112 = vadd.xlane.f32.xlu0 %v111
  %v113 = vpop.xlane.xlu0 %112
  %v114 = vadd.f32 %v51, %v113
  %vm115 = vcmask 1024
  %116 = vst.msk [vmem:[#allocation2] sm:$0x3] %vm115, %v114
  %v117 = vld [vmem:[#allocation3] sm:$0x3]
  %v118 = vmul.f32 %v49, %v49
  %v119 = vmul.f32 %v50, %v50
  %v122 = vcombine.high %v118, %v118
  %v124 = vunpack.c.l.s4 1983009808
  %v125 = vunpack.c.0.s8 %v124
  %v126 = vlaneseq
  %v127 = vshrl.u32 %v126, 7
  %v128 = vsub.s32 %v125, %v127
  %v129 = vrot.slane %v118, %v128
  %v131 = vunpack.c.l.s4 1983009808
  %v132 = vunpack.c.0.s8 %v131
  %v133 = vlaneseq
  %v134 = vshrl.u32 %v133, 7
  %v135 = vsub.s32 %v132, %v134
  %v136 = vrot.slane %v122, %v135
  %v137 = vcombine.high %v129, %v129
  %v138 = vcombine.high %v136, %v136
  %v139 = vcombine.high %v119, %v119
  %v141 = vunpack.c.l.s4 1983009808
  %v142 = vunpack.c.0.s8 %v141
  %v143 = vlaneseq
  %v144 = vshrl.u32 %v143, 7
  %v145 = vsub.s32 %v142, %v144
  %v146 = vrot.slane %v119, %v145
  %v148 = vunpack.c.l.s4 1983009808
  %v149 = vunpack.c.0.s8 %v148
  %v150 = vlaneseq
  %v151 = vshrl.u32 %v150, 7
  %v152 = vsub.s32 %v149, %v151
  %v153 = vrot.slane %v139, %v152
  %v154 = vcombine.high %v146, %v146
  %v155 = vcombine.high %v153, %v153
  %v164 = vsel %vm96, %v129, 0.0
  %v165 = vsel %vm96, %v137, 0.0
  %v166 = vadd.f32 %v164, %v165
  %v167 = vsel %vm96, %v136, 0.0
  %v168 = vadd.f32 %v166, %v167
  %v169 = vsel %vm96, %v138, 0.0
  %v170 = vadd.f32 %v168, %v169
  %v171 = vsel %vm96, %v146, 0.0
  %v172 = vadd.f32 %v170, %v171
  %v173 = vsel %vm96, %v154, 0.0
  %v174 = vadd.f32 %v172, %v173
  %v175 = vsel %vm96, %v153, 0.0
  %v176 = vadd.f32 %v174, %v175
  %v177 = vsel %vm96, %v155, 0.0
  %v178 = vadd.f32 %v176, %v177
  %179 = vadd.xlane.f32.xlu0 %v178
  %v180 = vpop.xlane.xlu0 %179
  %v181 = vadd.f32 %v117, %v180
  %182 = vst.msk [vmem:[#allocation3] sm:$0x3] %vm115, %v181
  // Predicated region
  $region10: #{_prior_loss_stats.1} parent=0 // pred_check
    %p183 = pneg %p42
  $region11: #{_prior_loss_stats.1} parent=0 // pred_check_branch
    %185 = sbr.rel (%p183) target = $region13
  $region12: #{_prior_loss_stats.1} parent=0 // pred_region
    %v186 = vld [vmem:[#allocation2] sm:$0x3]
    %187 = vst.msk [vmem:[%s1] sm:$0x3] %vm115, %v186
    %v188 = vld [vmem:[#allocation3] sm:$0x3]
    %189 = vst.msk [vmem:[%s2] sm:$0x3] %vm115, %v188
  $region13: #{_prior_loss_stats.1} parent=0 // pred_fallthru
    _
  // Predicated region
  $region14: #{_prior_loss_stats.1} parent=0 // pred_check
    _
  $region15: #{_prior_loss_stats.1} parent=0 // pred_check_branch
    %191 = sbr.rel (0) target = $region17
  $region16: #{_prior_loss_stats.1} parent=0 // pred_region
    _
  $region17: #{_prior_loss_stats.1} parent=0 // pred_fallthru
    _
  // Predicated region
  $region18: #{_prior_loss_stats.1} parent=0 // pred_check
    _
  $region19: #{_prior_loss_stats.1} parent=0 // pred_check_branch
    %193 = sbr.rel (0) target = $region21
  $region20: #{_prior_loss_stats.1} parent=0 // pred_region
    _
  $region21: #{_prior_loss_stats.1} parent=0 // pred_fallthru
    _
  // Predicated region
  $region22: #{_prior_loss_stats.1} parent=0 // pred_check
    _
  $region23: #{_prior_loss_stats.1} parent=0 // pred_check_branch
    %195 = sbr.rel (0) target = $region25
  $region24: #{_prior_loss_stats.1} parent=0 // pred_region
    _
  $region25: #{_prior_loss_stats.1} parent=0 // pred_fallthru
    _
  // Predicated region
  $region26: #{_prior_loss_stats.1} parent=0 // pred_check
    _
  $region27: #{_prior_loss_stats.1} parent=0 // pred_check_branch
    %197 = sbr.rel (0) target = $region29
  $region28: #{_prior_loss_stats.1} parent=0 // pred_region
    _
  $region29: #{_prior_loss_stats.1} parent=0 // pred_fallthru
    _

</llo_original>
